<compile_context>
chip_gen: v7x
topology: tpu7x:2x2x1
jax: 0.10.0
libtpu: 0.0.40
codegen_flags: <defaults>
</compile_context>

<pallas_src>
import functools
import math

import jax
import jax.numpy as jnp
from jax.experimental import pallas as pl
from jax.experimental.pallas import tpu as pltpu

BN_EPS = 1e-5
_LANE = 128


def _round_up(x, m):
    return ((x + m - 1) // m) * m


def _vmem_limit_bytes():
    """Generation-gated scoped-VMEM budget (v7x: 64 MiB physical per TC, v5e/v6e: 128 MiB)."""
    try:
        cap = int(pltpu.get_tpu_info().vmem_capacity_bytes)
    except Exception:
        cap = 64 << 20  # conservative fallback: v7x physical VMEM per TensorCore
    return max(32 << 20, min(3 * cap // 4, 100 << 20))


def _mix2d(w, x):
    """Channel mix (Co, Ci) @ (Ci, T) -> (Co, T), f32.

    Tiny channel counts run as VPU broadcast-FMAs (a (8, Ci<=8) matmul would
    leave the MXU systolic array nearly idle); the MXU engages only when both
    dims can reasonably fill it, and keeps f32 operands to preserve tolerance."""
    co, ci = w.shape
    if min(co, ci) >= 128:
        return jnp.dot(w, x, preferred_element_type=jnp.float32)
    # TODO(synk): if this ever becomes VPU-bound post-fusion, the sublane
    # broadcast of x rows could use a stride-0 pl.ds load instead.
    acc = w[:, 0:1] * x[0:1, :]
    for c in range(1, ci):
        acc = acc + w[:, c:c + 1] * x[c:c + 1, :]
    return acc


def _conv1_partial_stats(x_ref, w1, n_images):
    """Per-channel (sum, sumsq) of conv1(x) over this block's N x tile elements."""
    s = sq = None
    for n in range(n_images):            # static unroll; N is small for this stem
        y = _mix2d(w1, x_ref[n].astype(jnp.float32))          # (Cin, tile)
        ys = jnp.sum(y, axis=1, keepdims=True)                # (Cin, 1)
        yq = jnp.sum(y * y, axis=1, keepdims=True)
        s = ys if s is None else s + ys
        sq = yq if sq is None else sq + yq
    return s, sq


# ---------------- fused single-call path (whole problem resident in VMEM) ----

def _fused_kernel(count, n_images, x_ref, w1_ref, w2_ref, o_ref):
    w1 = w1_ref[...]
    w2 = w2_ref[...]
    # Sweep 1 over the VMEM-resident x: BN batch statistics of y = conv1(x).
    s, sq = _conv1_partial_stats(x_ref, w1, n_images)
    inv = 1.0 / count
    mean = s * inv
    # TODO(synk): E[y^2]-E[y]^2 in f32 can cancel for large-mean conv1 outputs;
    # fine for Kaiming-init weights / roughly zero-mean inputs.
    var = jnp.maximum(sq * inv - mean * mean, 0.0)
    a = jax.lax.rsqrt(var + BN_EPS)        # gamma = 1
    b = -mean * a                          # beta  = 0
    w1p = w1 * a                           # fold BN scale into conv1 rows
    # Sweep 2: out = conv2(relu(conv1'(x) + b)).  conv1 is recomputed from the
    # resident x (a handful of VPU FMAs) rather than holding y in a second buffer.
    for n in range(n_images):
        h = jnp.maximum(_mix2d(w1p, x_ref[n].astype(jnp.float32)) + b, 0.0)
        o_ref[n] = _mix2d(w2, h).astype(o_ref.dtype)


# ---------------- two-pass tiled path (large HW) ------------------------------

def _stats_kernel(n_images, x_ref, w1_ref, part_ref):
    # Emits per-tile partial (sum, sumsq) as an output block -> the grid axis can
    # be "parallel" (v7x megacore); the tiny finalize happens in plain JAX.
    s, sq = _conv1_partial_stats(x_ref, w1_ref[...], n_images)
    part_ref[:, 0:1] = s
    part_ref[:, 1:2] = sq


def _apply_kernel(n_images, x_ref, w1p_ref, b_ref, w2_ref, o_ref):
    # out = conv2(relu(conv1'(x) + b)) with the BN scale pre-folded into w1'.
    w1p = w1p_ref[...]
    w2 = w2_ref[...]
    b = b_ref[...]
    for n in range(n_images):
        h = jnp.maximum(_mix2d(w1p, x_ref[n].astype(jnp.float32)) + b, 0.0)
        o_ref[n] = _mix2d(w2, h).astype(o_ref.dtype)


# ---------------- wrapper ------------------------------------------------------

def cnnblock1x1_forward(x_nchw, w1, w2, *, force_two_pass=False, tile_cap_lanes=None):
    """x_nchw: (N, Cin, H, W); w1: (Cin, Cin, 1, 1); w2: (Cout, Cin, 1, 1)."""
    N, Cin, H, W = x_nchw.shape
    Cout = w2.shape[0]
    HW = H * W
    count = float(N * HW)

    w1_m = w1.reshape(Cin, Cin).astype(jnp.float32)   # conv1 weight (Cin, Cin)
    w2_m = w2.reshape(Cout, Cin).astype(jnp.float32)  # conv2 weight (Cout, Cin)

    vmem_limit = _vmem_limit_bytes()
    io_budget = (vmem_limit * 3) // 5   # headroom for intermediates / compiler scratch

    hw128 = _round_up(HW, _LANE)
    # Bytes per lane column per grid step: double-buffered in+out blocks + f32 temps.
    bytes_per_lane = 8 * N * (Cin + Cout) + 4 * (2 * Cin + Cout)

    def cparams(sem):
        return pltpu.CompilerParams(dimension_semantics=sem,
                                    vmem_limit_bytes=vmem_limit)

    # NCHW -> (N, C, H*W): pure reshape, no transpose / extra HBM pass.
    x3 = x_nchw.reshape(N, Cin, HW)

    use_fused = (hw128 * bytes_per_lane <= io_budget) and not force_two_pass \
        and tile_cap_lanes is None

    if use_fused:
        # One launch, one x read, one out write; stats + apply fused in-kernel.
        HW_pad = hw128
        if HW_pad != HW:
            x3 = jnp.pad(x3, ((0, 0), (0, 0), (0, HW_pad - HW)))   # zeros: BN-neutral
        out3 = pl.pallas_call(
            functools.partial(_fused_kernel, count, N),
            grid=(1,),
            in_specs=[pl.BlockSpec((N, Cin, HW_pad), lambda i: (0, 0, 0)),
                      pl.BlockSpec((Cin, Cin), lambda i: (0, 0)),
                      pl.BlockSpec((Cout, Cin), lambda i: (0, 0))],
            out_specs=pl.BlockSpec((N, Cout, HW_pad), lambda i: (0, 0, 0)),
            out_shape=jax.ShapeDtypeStruct((N, Cout, HW_pad), x_nchw.dtype),
            compiler_params=cparams(("arbitrary",)),
        )(x3, w1_m, w2_m)
    else:
        # Spatial tile: whole image if it fits the budget, else the largest
        # lane tile that does; balancing tiles bounds pad waste to <128/tile.
        cap = max(_LANE, (io_budget // bytes_per_lane) // _LANE * _LANE)
        if tile_cap_lanes is not None:
            cap = min(cap, max(_LANE, _round_up(tile_cap_lanes, _LANE)))
        T = -(-hw128 // min(cap, hw128))
        tile = _round_up(-(-hw128 // T), _LANE)
        HW_pad = tile * T
        if HW_pad != HW:
            x3 = jnp.pad(x3, ((0, 0), (0, 0), (0, HW_pad - HW)))   # zeros: BN-neutral

        x_spec = pl.BlockSpec((N, Cin, tile), lambda t: (0, 0, t))
        w1_spec = pl.BlockSpec((Cin, Cin), lambda t: (0, 0))
        w2_spec = pl.BlockSpec((Cout, Cin), lambda t: (0, 0))

        # Pass 1: per-tile partial (sum, sumsq) on a fully parallel grid.
        partials = pl.pallas_call(
            functools.partial(_stats_kernel, N),
            grid=(T,),
            in_specs=[x_spec, w1_spec],
            out_specs=pl.BlockSpec((None, Cin, 2), lambda t: (t, 0, 0)),
            out_shape=jax.ShapeDtypeStruct((T, Cin, 2), jnp.float32),
            compiler_params=cparams(("parallel",)),
        )(x3, w1_m)

        # Finalize the Cin-sized statistics in plain JAX; fold scale into conv1.
        sums = jnp.sum(partials, axis=0)                         # (Cin, 2)
        mean = sums[:, 0] / count
        var = jnp.maximum(sums[:, 1] / count - mean * mean, 0.0)
        a = jax.lax.rsqrt(var + BN_EPS)                          # gamma = 1
        bias = (-mean * a)[:, None].astype(jnp.float32)          # (Cin, 1), beta = 0
        w1p = w1_m * a[:, None]                                  # row-scaled conv1

        # Pass 2: fully parallel apply (megacore-shardable on v7x).
        out3 = pl.pallas_call(
            functools.partial(_apply_kernel, N),
            grid=(T,),
            in_specs=[x_spec, w1_spec,
                      pl.BlockSpec((Cin, 1), lambda t: (0, 0)),
                      w2_spec],
            out_specs=pl.BlockSpec((N, Cout, tile), lambda t: (0, 0, t)),
            out_shape=jax.ShapeDtypeStruct((N, Cout, HW_pad), x_nchw.dtype),
            compiler_params=cparams(("parallel",)),
        )(x3, w1p, bias, w2_m)

    # (N, Cout, HW) -> NCHW: slice off padded columns, then pure reshape.
    return out3[:, :, :HW].reshape(N, Cout, H, W)


# ---------------- reference / init / test -------------------------------------

def _reference(x, w1, w2):
    Cin = x.shape[1]
    w1m = w1.reshape(w1.shape[0], Cin)
    w2m = w2.reshape(w2.shape[0], Cin)
    y = jnp.einsum('oi,nihw->nohw', w1m, x)
    mean = y.mean(axis=(0, 2, 3), keepdims=True)
    var = ((y - mean) ** 2).mean(axis=(0, 2, 3), keepdims=True)
    h = jnp.maximum((y - mean) * jax.lax.rsqrt(var + BN_EPS), 0.0)
    return jnp.einsum('oi,nihw->nohw', w2m, h)


def kaiming_normal_fan_out_relu(key, out_ch, in_ch):
    """nn.init.kaiming_normal_(mode='fan_out', nonlinearity='relu') for a
    (out_ch, in_ch, 1, 1) conv weight: std = sqrt(2 / fan_out), fan_out = out_ch."""
    std = math.sqrt(2.0 / out_ch)
    return std * jax.random.normal(key, (out_ch, in_ch, 1, 1), dtype=jnp.float32)


if __name__ == "__main__":
    # Small shapes consistent with the module: batch=2, in_planes=4, planes=8, 16x16.
    N, in_planes, planes, Hs, Ws = 2, 4, 8, 16, 16

    key = jax.random.PRNGKey(0)
    kx, kw1, kw2 = jax.random.split(key, 3)

    x = jax.random.normal(kx, (N, in_planes, Hs, Ws), dtype=jnp.float32)
    w1 = kaiming_normal_fan_out_relu(kw1, in_planes, in_planes)  # conv1: Cin->Cin
    w2 = kaiming_normal_fan_out_relu(kw2, planes, in_planes)     # conv2: Cin->planes

    ref = _reference(x, w1, w2)

    # Fused single-call path (taken automatically for these small shapes).
    out_fused = cnnblock1x1_forward(x, w1, w2)
    jax.block_until_ready(out_fused)
    assert out_fused.shape == (N, planes, Hs, Ws)
    assert jnp.allclose(out_fused, ref, atol=1e-4, rtol=1e-4)

    # Two-pass tiled path (what large HW would use), forced at a small tile so the
    # parallel partial-stats grid, JAX finalize, and folded-scale apply are exercised.
    out_tiled = cnnblock1x1_forward(x, w1, w2, force_two_pass=True, tile_cap_lanes=128)
    jax.block_until_ready(out_tiled)
    assert jnp.allclose(out_tiled, ref, atol=1e-4, rtol=1e-4)

    print("KERNEL_OK")
</pallas_src>

<mosaic_0001>
module attributes {stable_mosaic.version = 11 : i64} {
  func.func @_fused_kernel(%arg0: i32, %arg1: memref<2x4x256xf32, #tpu.memory_space<vmem>>, %arg2: memref<4x4xf32, #tpu.memory_space<vmem>>, %arg3: memref<8x4xf32, #tpu.memory_space<vmem>>, %arg4: memref<2x8x256xf32, #tpu.memory_space<vmem>>) attributes {dimension_semantics = [#tpu.dimension_semantics<arbitrary>], iteration_bounds = array<i64: 1>, scalar_prefetch = 0 : i64, scratch_operands = 0 : i64, tpu.core_type = #tpu.core_type<tc>, window_params = [{pipeline_mode = #tpu.pipeline_mode<synchronous>, transform_indices = @transform_0, window_bounds = array<i64: 2, 4, 256>}, {pipeline_mode = #tpu.pipeline_mode<synchronous>, transform_indices = @transform_1, window_bounds = array<i64: 4, 4>}, {pipeline_mode = #tpu.pipeline_mode<synchronous>, transform_indices = @transform_2, window_bounds = array<i64: 8, 4>}, {pipeline_mode = #tpu.pipeline_mode<synchronous>, transform_indices = @transform_3, window_bounds = array<i64: 2, 8, 256>}]} {
    %c0 = arith.constant 0 : index
    %c0_0 = arith.constant 0 : index
    %0 = vector.load %arg2[%c0, %c0_0] : memref<4x4xf32, #tpu.memory_space<vmem>>, vector<4x4xf32>
    %c0_1 = arith.constant 0 : index
    %c0_2 = arith.constant 0 : index
    %1 = vector.load %arg3[%c0_1, %c0_2] : memref<8x4xf32, #tpu.memory_space<vmem>>, vector<8x4xf32>
    %c0_3 = arith.constant 0 : index
    %c0_4 = arith.constant 0 : index
    %c0_5 = arith.constant 0 : index
    %2 = vector.load %arg1[%c0_3, %c0_4, %c0_5] : memref<2x4x256xf32, #tpu.memory_space<vmem>>, vector<1x4x256xf32>
    %3 = vector.shape_cast %2 : vector<1x4x256xf32> to vector<4x256xf32>
    %4 = vector.extract_strided_slice %0 {offsets = [0, 0], sizes = [4, 1], strides = [1, 1]} : vector<4x4xf32> to vector<4x1xf32>
    %5 = vector.extract_strided_slice %3 {offsets = [0, 0], sizes = [1, 256], strides = [1, 1]} : vector<4x256xf32> to vector<1x256xf32>
    %6 = vector.broadcast %4 : vector<4x1xf32> to vector<4x256xf32>
    %7 = vector.broadcast %5 : vector<1x256xf32> to vector<4x256xf32>
    %8 = arith.mulf %6, %7 : vector<4x256xf32>
    %9 = vector.extract_strided_slice %0 {offsets = [0, 1], sizes = [4, 1], strides = [1, 1]} : vector<4x4xf32> to vector<4x1xf32>
    %10 = vector.extract_strided_slice %3 {offsets = [1, 0], sizes = [1, 256], strides = [1, 1]} : vector<4x256xf32> to vector<1x256xf32>
    %11 = vector.broadcast %9 : vector<4x1xf32> to vector<4x256xf32>
    %12 = vector.broadcast %10 : vector<1x256xf32> to vector<4x256xf32>
    %13 = arith.mulf %11, %12 : vector<4x256xf32>
    %14 = arith.addf %8, %13 : vector<4x256xf32>
    %15 = vector.extract_strided_slice %0 {offsets = [0, 2], sizes = [4, 1], strides = [1, 1]} : vector<4x4xf32> to vector<4x1xf32>
    %16 = vector.extract_strided_slice %3 {offsets = [2, 0], sizes = [1, 256], strides = [1, 1]} : vector<4x256xf32> to vector<1x256xf32>
    %17 = vector.broadcast %15 : vector<4x1xf32> to vector<4x256xf32>
    %18 = vector.broadcast %16 : vector<1x256xf32> to vector<4x256xf32>
    %19 = arith.mulf %17, %18 : vector<4x256xf32>
    %20 = arith.addf %14, %19 : vector<4x256xf32>
    %21 = vector.extract_strided_slice %0 {offsets = [0, 3], sizes = [4, 1], strides = [1, 1]} : vector<4x4xf32> to vector<4x1xf32>
    %22 = vector.extract_strided_slice %3 {offsets = [3, 0], sizes = [1, 256], strides = [1, 1]} : vector<4x256xf32> to vector<1x256xf32>
    %23 = vector.broadcast %21 : vector<4x1xf32> to vector<4x256xf32>
    %24 = vector.broadcast %22 : vector<1x256xf32> to vector<4x256xf32>
    %25 = arith.mulf %23, %24 : vector<4x256xf32>
    %26 = arith.addf %20, %25 : vector<4x256xf32>
    %cst = arith.constant dense<0.000000e+00> : vector<4xf32>
    %27 = vector.multi_reduction <add>, %26, %cst [1] : vector<4x256xf32> to vector<4xf32>
    %28 = vector.shape_cast %27 : vector<4xf32> to vector<4x1xf32>
    %29 = arith.mulf %26, %26 : vector<4x256xf32>
    %cst_6 = arith.constant dense<0.000000e+00> : vector<4xf32>
    %30 = vector.multi_reduction <add>, %29, %cst_6 [1] : vector<4x256xf32> to vector<4xf32>
    %31 = vector.shape_cast %30 : vector<4xf32> to vector<4x1xf32>
    %c1 = arith.constant 1 : index
    %c0_7 = arith.constant 0 : index
    %c0_8 = arith.constant 0 : index
    %32 = vector.load %arg1[%c1, %c0_7, %c0_8] : memref<2x4x256xf32, #tpu.memory_space<vmem>>, vector<1x4x256xf32>
    %33 = vector.shape_cast %32 : vector<1x4x256xf32> to vector<4x256xf32>
    %34 = vector.extract_strided_slice %0 {offsets = [0, 0], sizes = [4, 1], strides = [1, 1]} : vector<4x4xf32> to vector<4x1xf32>
    %35 = vector.extract_strided_slice %33 {offsets = [0, 0], sizes = [1, 256], strides = [1, 1]} : vector<4x256xf32> to vector<1x256xf32>
    %36 = vector.broadcast %34 : vector<4x1xf32> to vector<4x256xf32>
    %37 = vector.broadcast %35 : vector<1x256xf32> to vector<4x256xf32>
    %38 = arith.mulf %36, %37 : vector<4x256xf32>
    %39 = vector.extract_strided_slice %0 {offsets = [0, 1], sizes = [4, 1], strides = [1, 1]} : vector<4x4xf32> to vector<4x1xf32>
    %40 = vector.extract_strided_slice %33 {offsets = [1, 0], sizes = [1, 256], strides = [1, 1]} : vector<4x256xf32> to vector<1x256xf32>
    %41 = vector.broadcast %39 : vector<4x1xf32> to vector<4x256xf32>
    %42 = vector.broadcast %40 : vector<1x256xf32> to vector<4x256xf32>
    %43 = arith.mulf %41, %42 : vector<4x256xf32>
    %44 = arith.addf %38, %43 : vector<4x256xf32>
    %45 = vector.extract_strided_slice %0 {offsets = [0, 2], sizes = [4, 1], strides = [1, 1]} : vector<4x4xf32> to vector<4x1xf32>
    %46 = vector.extract_strided_slice %33 {offsets = [2, 0], sizes = [1, 256], strides = [1, 1]} : vector<4x256xf32> to vector<1x256xf32>
    %47 = vector.broadcast %45 : vector<4x1xf32> to vector<4x256xf32>
    %48 = vector.broadcast %46 : vector<1x256xf32> to vector<4x256xf32>
    %49 = arith.mulf %47, %48 : vector<4x256xf32>
    %50 = arith.addf %44, %49 : vector<4x256xf32>
    %51 = vector.extract_strided_slice %0 {offsets = [0, 3], sizes = [4, 1], strides = [1, 1]} : vector<4x4xf32> to vector<4x1xf32>
    %52 = vector.extract_strided_slice %33 {offsets = [3, 0], sizes = [1, 256], strides = [1, 1]} : vector<4x256xf32> to vector<1x256xf32>
    %53 = vector.broadcast %51 : vector<4x1xf32> to vector<4x256xf32>
    %54 = vector.broadcast %52 : vector<1x256xf32> to vector<4x256xf32>
    %55 = arith.mulf %53, %54 : vector<4x256xf32>
    %56 = arith.addf %50, %55 : vector<4x256xf32>
    %cst_9 = arith.constant dense<0.000000e+00> : vector<4xf32>
    %57 = vector.multi_reduction <add>, %56, %cst_9 [1] : vector<4x256xf32> to vector<4xf32>
    %58 = vector.shape_cast %57 : vector<4xf32> to vector<4x1xf32>
    %59 = arith.mulf %56, %56 : vector<4x256xf32>
    %cst_10 = arith.constant dense<0.000000e+00> : vector<4xf32>
    %60 = vector.multi_reduction <add>, %59, %cst_10 [1] : vector<4x256xf32> to vector<4xf32>
    %61 = vector.shape_cast %60 : vector<4xf32> to vector<4x1xf32>
    %62 = arith.addf %28, %58 : vector<4x1xf32>
    %63 = arith.addf %31, %61 : vector<4x1xf32>
    %cst_11 = arith.constant 0.001953125 : f32
    %64 = vector.broadcast %cst_11 : f32 to vector<4x1xf32>
    %65 = arith.mulf %62, %64 : vector<4x1xf32>
    %cst_12 = arith.constant 0.001953125 : f32
    %66 = vector.broadcast %cst_12 : f32 to vector<4x1xf32>
    %67 = arith.mulf %63, %66 : vector<4x1xf32>
    %68 = arith.mulf %65, %65 : vector<4x1xf32>
    %69 = arith.subf %67, %68 : vector<4x1xf32>
    %cst_13 = arith.constant 0.000000e+00 : f32
    %70 = vector.broadcast %cst_13 : f32 to vector<4x1xf32>
    %71 = arith.maximumf %69, %70 : vector<4x1xf32>
    %cst_14 = arith.constant 9.99999974E-6 : f32
    %72 = vector.broadcast %cst_14 : f32 to vector<4x1xf32>
    %73 = arith.addf %71, %72 : vector<4x1xf32>
    %74 = math.rsqrt %73 : vector<4x1xf32>
    %cst_15 = arith.constant 0.000000e+00 : f32
    %75 = vector.broadcast %cst_15 : f32 to vector<4x1xf32>
    %76 = arith.subf %75, %65 : vector<4x1xf32>
    %77 = arith.mulf %76, %74 : vector<4x1xf32>
    %78 = vector.broadcast %74 : vector<4x1xf32> to vector<4x4xf32>
    %79 = arith.mulf %0, %78 : vector<4x4xf32>
    %c0_16 = arith.constant 0 : index
    %c0_17 = arith.constant 0 : index
    %c0_18 = arith.constant 0 : index
    %80 = vector.load %arg1[%c0_16, %c0_17, %c0_18] : memref<2x4x256xf32, #tpu.memory_space<vmem>>, vector<1x4x256xf32>
    %81 = vector.shape_cast %80 : vector<1x4x256xf32> to vector<4x256xf32>
    %82 = vector.extract_strided_slice %79 {offsets = [0, 0], sizes = [4, 1], strides = [1, 1]} : vector<4x4xf32> to vector<4x1xf32>
    %83 = vector.extract_strided_slice %81 {offsets = [0, 0], sizes = [1, 256], strides = [1, 1]} : vector<4x256xf32> to vector<1x256xf32>
    %84 = vector.broadcast %82 : vector<4x1xf32> to vector<4x256xf32>
    %85 = vector.broadcast %83 : vector<1x256xf32> to vector<4x256xf32>
    %86 = arith.mulf %84, %85 : vector<4x256xf32>
    %87 = vector.extract_strided_slice %79 {offsets = [0, 1], sizes = [4, 1], strides = [1, 1]} : vector<4x4xf32> to vector<4x1xf32>
    %88 = vector.extract_strided_slice %81 {offsets = [1, 0], sizes = [1, 256], strides = [1, 1]} : vector<4x256xf32> to vector<1x256xf32>
    %89 = vector.broadcast %87 : vector<4x1xf32> to vector<4x256xf32>
    %90 = vector.broadcast %88 : vector<1x256xf32> to vector<4x256xf32>
    %91 = arith.mulf %89, %90 : vector<4x256xf32>
    %92 = arith.addf %86, %91 : vector<4x256xf32>
    %93 = vector.extract_strided_slice %79 {offsets = [0, 2], sizes = [4, 1], strides = [1, 1]} : vector<4x4xf32> to vector<4x1xf32>
    %94 = vector.extract_strided_slice %81 {offsets = [2, 0], sizes = [1, 256], strides = [1, 1]} : vector<4x256xf32> to vector<1x256xf32>
    %95 = vector.broadcast %93 : vector<4x1xf32> to vector<4x256xf32>
    %96 = vector.broadcast %94 : vector<1x256xf32> to vector<4x256xf32>
    %97 = arith.mulf %95, %96 : vector<4x256xf32>
    %98 = arith.addf %92, %97 : vector<4x256xf32>
    %99 = vector.extract_strided_slice %79 {offsets = [0, 3], sizes = [4, 1], strides = [1, 1]} : vector<4x4xf32> to vector<4x1xf32>
    %100 = vector.extract_strided_slice %81 {offsets = [3, 0], sizes = [1, 256], strides = [1, 1]} : vector<4x256xf32> to vector<1x256xf32>
    %101 = vector.broadcast %99 : vector<4x1xf32> to vector<4x256xf32>
    %102 = vector.broadcast %100 : vector<1x256xf32> to vector<4x256xf32>
    %103 = arith.mulf %101, %102 : vector<4x256xf32>
    %104 = arith.addf %98, %103 : vector<4x256xf32>
    %105 = vector.broadcast %77 : vector<4x1xf32> to vector<4x256xf32>
    %106 = arith.addf %104, %105 : vector<4x256xf32>
    %cst_19 = arith.constant 0.000000e+00 : f32
    %107 = vector.broadcast %cst_19 : f32 to vector<4x256xf32>
    %108 = arith.maximumf %106, %107 : vector<4x256xf32>
    %109 = vector.extract_strided_slice %1 {offsets = [0, 0], sizes = [8, 1], strides = [1, 1]} : vector<8x4xf32> to vector<8x1xf32>
    %110 = vector.extract_strided_slice %108 {offsets = [0, 0], sizes = [1, 256], strides = [1, 1]} : vector<4x256xf32> to vector<1x256xf32>
    %111 = vector.broadcast %109 : vector<8x1xf32> to vector<8x256xf32>
    %112 = vector.broadcast %110 : vector<1x256xf32> to vector<8x256xf32>
    %113 = arith.mulf %111, %112 : vector<8x256xf32>
    %114 = vector.extract_strided_slice %1 {offsets = [0, 1], sizes = [8, 1], strides = [1, 1]} : vector<8x4xf32> to vector<8x1xf32>
    %115 = vector.extract_strided_slice %108 {offsets = [1, 0], sizes = [1, 256], strides = [1, 1]} : vector<4x256xf32> to vector<1x256xf32>
    %116 = vector.broadcast %114 : vector<8x1xf32> to vector<8x256xf32>
    %117 = vector.broadcast %115 : vector<1x256xf32> to vector<8x256xf32>
    %118 = arith.mulf %116, %117 : vector<8x256xf32>
    %119 = arith.addf %113, %118 : vector<8x256xf32>
    %120 = vector.extract_strided_slice %1 {offsets = [0, 2], sizes = [8, 1], strides = [1, 1]} : vector<8x4xf32> to vector<8x1xf32>
    %121 = vector.extract_strided_slice %108 {offsets = [2, 0], sizes = [1, 256], strides = [1, 1]} : vector<4x256xf32> to vector<1x256xf32>
    %122 = vector.broadcast %120 : vector<8x1xf32> to vector<8x256xf32>
    %123 = vector.broadcast %121 : vector<1x256xf32> to vector<8x256xf32>
    %124 = arith.mulf %122, %123 : vector<8x256xf32>
    %125 = arith.addf %119, %124 : vector<8x256xf32>
    %126 = vector.extract_strided_slice %1 {offsets = [0, 3], sizes = [8, 1], strides = [1, 1]} : vector<8x4xf32> to vector<8x1xf32>
    %127 = vector.extract_strided_slice %108 {offsets = [3, 0], sizes = [1, 256], strides = [1, 1]} : vector<4x256xf32> to vector<1x256xf32>
    %128 = vector.broadcast %126 : vector<8x1xf32> to vector<8x256xf32>
    %129 = vector.broadcast %127 : vector<1x256xf32> to vector<8x256xf32>
    %130 = arith.mulf %128, %129 : vector<8x256xf32>
    %131 = arith.addf %125, %130 : vector<8x256xf32>
    %c0_20 = arith.constant 0 : index
    %c0_21 = arith.constant 0 : index
    %c0_22 = arith.constant 0 : index
    %132 = vector.load %arg4[%c0_20, %c0_21, %c0_22] : memref<2x8x256xf32, #tpu.memory_space<vmem>>, vector<1x8x256xf32>
    %133 = vector.shape_cast %132 : vector<1x8x256xf32> to vector<8x256xf32>
    %134 = vector.shape_cast %131 : vector<8x256xf32> to vector<1x8x256xf32>
    tpu.vector_store %arg4[%c0_20, %c0_21, %c0_22], %134 {strides = array<i32>} : memref<2x8x256xf32, #tpu.memory_space<vmem>>, vector<1x8x256xf32>,
    %c1_23 = arith.constant 1 : index
    %c0_24 = arith.constant 0 : index
    %c0_25 = arith.constant 0 : index
    %135 = vector.load %arg1[%c1_23, %c0_24, %c0_25] : memref<2x4x256xf32, #tpu.memory_space<vmem>>, vector<1x4x256xf32>
    %136 = vector.shape_cast %135 : vector<1x4x256xf32> to vector<4x256xf32>
    %137 = vector.extract_strided_slice %79 {offsets = [0, 0], sizes = [4, 1], strides = [1, 1]} : vector<4x4xf32> to vector<4x1xf32>
    %138 = vector.extract_strided_slice %136 {offsets = [0, 0], sizes = [1, 256], strides = [1, 1]} : vector<4x256xf32> to vector<1x256xf32>
    %139 = vector.broadcast %137 : vector<4x1xf32> to vector<4x256xf32>
    %140 = vector.broadcast %138 : vector<1x256xf32> to vector<4x256xf32>
    %141 = arith.mulf %139, %140 : vector<4x256xf32>
    %142 = vector.extract_strided_slice %79 {offsets = [0, 1], sizes = [4, 1], strides = [1, 1]} : vector<4x4xf32> to vector<4x1xf32>
    %143 = vector.extract_strided_slice %136 {offsets = [1, 0], sizes = [1, 256], strides = [1, 1]} : vector<4x256xf32> to vector<1x256xf32>
    %144 = vector.broadcast %142 : vector<4x1xf32> to vector<4x256xf32>
    %145 = vector.broadcast %143 : vector<1x256xf32> to vector<4x256xf32>
    %146 = arith.mulf %144, %145 : vector<4x256xf32>
    %147 = arith.addf %141, %146 : vector<4x256xf32>
    %148 = vector.extract_strided_slice %79 {offsets = [0, 2], sizes = [4, 1], strides = [1, 1]} : vector<4x4xf32> to vector<4x1xf32>
    %149 = vector.extract_strided_slice %136 {offsets = [2, 0], sizes = [1, 256], strides = [1, 1]} : vector<4x256xf32> to vector<1x256xf32>
    %150 = vector.broadcast %148 : vector<4x1xf32> to vector<4x256xf32>
    %151 = vector.broadcast %149 : vector<1x256xf32> to vector<4x256xf32>
    %152 = arith.mulf %150, %151 : vector<4x256xf32>
    %153 = arith.addf %147, %152 : vector<4x256xf32>
    %154 = vector.extract_strided_slice %79 {offsets = [0, 3], sizes = [4, 1], strides = [1, 1]} : vector<4x4xf32> to vector<4x1xf32>
    %155 = vector.extract_strided_slice %136 {offsets = [3, 0], sizes = [1, 256], strides = [1, 1]} : vector<4x256xf32> to vector<1x256xf32>
    %156 = vector.broadcast %154 : vector<4x1xf32> to vector<4x256xf32>
    %157 = vector.broadcast %155 : vector<1x256xf32> to vector<4x256xf32>
    %158 = arith.mulf %156, %157 : vector<4x256xf32>
    %159 = arith.addf %153, %158 : vector<4x256xf32>
    %160 = vector.broadcast %77 : vector<4x1xf32> to vector<4x256xf32>
    %161 = arith.addf %159, %160 : vector<4x256xf32>
    %cst_26 = arith.constant 0.000000e+00 : f32
    %162 = vector.broadcast %cst_26 : f32 to vector<4x256xf32>
    %163 = arith.maximumf %161, %162 : vector<4x256xf32>
    %164 = vector.extract_strided_slice %1 {offsets = [0, 0], sizes = [8, 1], strides = [1, 1]} : vector<8x4xf32> to vector<8x1xf32>
    %165 = vector.extract_strided_slice %163 {offsets = [0, 0], sizes = [1, 256], strides = [1, 1]} : vector<4x256xf32> to vector<1x256xf32>
    %166 = vector.broadcast %164 : vector<8x1xf32> to vector<8x256xf32>
    %167 = vector.broadcast %165 : vector<1x256xf32> to vector<8x256xf32>
    %168 = arith.mulf %166, %167 : vector<8x256xf32>
    %169 = vector.extract_strided_slice %1 {offsets = [0, 1], sizes = [8, 1], strides = [1, 1]} : vector<8x4xf32> to vector<8x1xf32>
    %170 = vector.extract_strided_slice %163 {offsets = [1, 0], sizes = [1, 256], strides = [1, 1]} : vector<4x256xf32> to vector<1x256xf32>
    %171 = vector.broadcast %169 : vector<8x1xf32> to vector<8x256xf32>
    %172 = vector.broadcast %170 : vector<1x256xf32> to vector<8x256xf32>
    %173 = arith.mulf %171, %172 : vector<8x256xf32>
    %174 = arith.addf %168, %173 : vector<8x256xf32>
    %175 = vector.extract_strided_slice %1 {offsets = [0, 2], sizes = [8, 1], strides = [1, 1]} : vector<8x4xf32> to vector<8x1xf32>
    %176 = vector.extract_strided_slice %163 {offsets = [2, 0], sizes = [1, 256], strides = [1, 1]} : vector<4x256xf32> to vector<1x256xf32>
    %177 = vector.broadcast %175 : vector<8x1xf32> to vector<8x256xf32>
    %178 = vector.broadcast %176 : vector<1x256xf32> to vector<8x256xf32>
    %179 = arith.mulf %177, %178 : vector<8x256xf32>
    %180 = arith.addf %174, %179 : vector<8x256xf32>
    %181 = vector.extract_strided_slice %1 {offsets = [0, 3], sizes = [8, 1], strides = [1, 1]} : vector<8x4xf32> to vector<8x1xf32>
    %182 = vector.extract_strided_slice %163 {offsets = [3, 0], sizes = [1, 256], strides = [1, 1]} : vector<4x256xf32> to vector<1x256xf32>
    %183 = vector.broadcast %181 : vector<8x1xf32> to vector<8x256xf32>
    %184 = vector.broadcast %182 : vector<1x256xf32> to vector<8x256xf32>
    %185 = arith.mulf %183, %184 : vector<8x256xf32>
    %186 = arith.addf %180, %185 : vector<8x256xf32>
    %c1_27 = arith.constant 1 : index
    %c0_28 = arith.constant 0 : index
    %c0_29 = arith.constant 0 : index
    %187 = vector.load %arg4[%c1_27, %c0_28, %c0_29] : memref<2x8x256xf32, #tpu.memory_space<vmem>>, vector<1x8x256xf32>
    %188 = vector.shape_cast %187 : vector<1x8x256xf32> to vector<8x256xf32>
    %189 = vector.shape_cast %186 : vector<8x256xf32> to vector<1x8x256xf32>
    tpu.vector_store %arg4[%c1_27, %c0_28, %c0_29], %189 {strides = array<i32>} : memref<2x8x256xf32, #tpu.memory_space<vmem>>, vector<1x8x256xf32>,
    return
  }
  func.func @transform_0(%arg0: i32) -> (i32, i32, i32) {
    %c0_i32 = arith.constant 0 : i32
    %c0_i32_0 = arith.constant 0 : i32
    %c0_i32_1 = arith.constant 0 : i32
    %c0_i32_2 = arith.constant 0 : i32
    return %c0_i32, %c0_i32_0, %c0_i32_1 : i32, i32, i32
  }
  func.func @transform_1(%arg0: i32) -> (i32, i32) {
    %c0_i32 = arith.constant 0 : i32
    %c0_i32_0 = arith.constant 0 : i32
    %c0_i32_1 = arith.constant 0 : i32
    return %c0_i32, %c0_i32_0 : i32, i32
  }
  func.func @transform_2(%arg0: i32) -> (i32, i32) {
    %c0_i32 = arith.constant 0 : i32
    %c0_i32_0 = arith.constant 0 : i32
    %c0_i32_1 = arith.constant 0 : i32
    return %c0_i32, %c0_i32_0 : i32, i32
  }
  func.func @transform_3(%arg0: i32) -> (i32, i32, i32) {
    %c0_i32 = arith.constant 0 : i32
    %c0_i32_0 = arith.constant 0 : i32
    %c0_i32_1 = arith.constant 0 : i32
    %c0_i32_2 = arith.constant 0 : i32
    return %c0_i32, %c0_i32_0, %c0_i32_1 : i32, i32, i32
  }
}

</mosaic_0001>

<llo_original>
// kernel: tpu_custom_call.1
$region0: #{tpu_custom_call.1}
  #allocation0 [shape = 'u32[]', space=smem, size = 0x4, offset = 0x4, fixed_abs, tag = 'smem constant byte address 0x4 - core index']
  #allocation1 [shape = 'u32[144,128]{1,0:T(1,128)}', space=vmem, size = 0x12000, scoped, tag = 'internal scratch']
  %s0 = inlined_call_operand.hbm [shape: f32[2,4,256], index: 0, kind: input, shape index: {}]
  %s1 = inlined_call_operand.vmem [shape: f32[4,4], index: 1, kind: input, shape index: {}]
  %s2 = inlined_call_operand.vmem [shape: f32[8,4], index: 2, kind: input, shape index: {}]
  %s3 = inlined_call_operand.hbm [shape: f32[2,8,256], index: 3, kind: output, shape index: {}]
  %s4 = sld [smem:[#allocation0]]
  $region26: #{tpu_custom_call.1} parent=0
    _
  %s6 = ssub.s32 1, %s4
  %s7 = scalar_select 0, %s6, %s4
  $region1: #{tpu_custom_call.1} parent=0
    #allocation2 [shape = 'u8[8192]{0}', space=vmem, size = 0x2000, scoped, tag = 'input window, operand 0, single buffered']
    #allocation3 [shape = 's32[1]{0}', space=sflag, size = 0x4, scoped, tag = 'scoped memory for tpu_custom_call.1']
    #allocation4 [shape = 's32[1]{0}', space=sflag, size = 0x4, scoped, tag = 'scoped memory for tpu_custom_call.1']
    #allocation5 [shape = 'u8[16384]{0}', space=vmem, size = 0x4000, scoped, tag = 'output window, operand 0, single buffered']
    %8 = vsyncpa [#allocation3], 0
    %9 = vsyncpa [#allocation4], 0
    // Predicated region
    $region2: #{tpu_custom_call.1} parent=1 // pred_check
      _
    $region3: #{tpu_custom_call.1} parent=1 // pred_check_branch
      %11 = sbr.rel (0) target = $region5
    $region4: #{tpu_custom_call.1} parent=1 // pred_region
      %s13 = ssub.s32 256, 256
      %14 = vsyncadd [#allocation3], %s13
      %s15 = sshll.u32 [#allocation2], 4
      %s16 = int_to_ptr.vmem [resolvable:$true] %s15
      %21 = dma.hbm_to_vmem [thread:$0]  %s0, 256, %s16, [#allocation3], 128, 128, 8
    $region5: #{tpu_custom_call.1} parent=1 // pred_fallthru
      _
    // Predicated region
    $region6: #{tpu_custom_call.1} parent=1 // pred_check
      _
    $region7: #{tpu_custom_call.1} parent=1 // pred_check_branch
      %23 = sbr.rel (0) target = $region9
    $region8: #{tpu_custom_call.1} parent=1 // pred_region
      _
    $region9: #{tpu_custom_call.1} parent=1 // pred_fallthru
      _
    // Predicated region
    $region10: #{tpu_custom_call.1} parent=1 // pred_check
      _
    $region11: #{tpu_custom_call.1} parent=1 // pred_check_branch
      %25 = sbr.rel (0) target = $region13
    $region12: #{tpu_custom_call.1} parent=1 // pred_region
      _
    $region13: #{tpu_custom_call.1} parent=1 // pred_fallthru
      _
    // Predicated region
    $region14: #{tpu_custom_call.1} parent=1 // pred_check
      _
    $region15: #{tpu_custom_call.1} parent=1 // pred_check_branch
      %27 = sbr.rel (0) target = $region17
    $region16: #{tpu_custom_call.1} parent=1 // pred_region
      %28 = dma.done [#allocation3], 256
    $region17: #{tpu_custom_call.1} parent=1 // pred_fallthru
      _
    %v29 = vld [vmem:[%s1] sm:$0xf]
    %v30 = vld [vmem:[%s2] sm:$0xff]
    %v31 = vld [vmem:[#allocation2] sm:$0xff]
    %33 = vset.pattern.permute.xlu0 0
    %34 = vperm.xlu0 %33, %v29
    %v35 = vpop.permute.xlu0 %34
    %v38 = vlaneseq
    %v39 = vshrl.u32 %v38, 7
    %v40 = vsub.s32 0, %v39
    %v41 = vrot.slane %v31, %v40
    %v42 = vlaneseq
    %v43 = vshrl.u32 %v42, 7
    %v44 = vsub.s32 4, %v43
    %v45 = vrot.slane %v31, %v44
    %v48 = vlaneseq
    %v49 = vshrl.u32 %v48, 7
    %v50 = vsub.s32 0, %v49
    %v51 = vrot.slane %v41, %v50
    %v52 = vlaneseq
    %v53 = vshrl.u32 %v52, 7
    %v54 = vsub.s32 0, %v53
    %v55 = vrot.slane %v45, %v54
    %v56 = vmul.f32 %v35, %v51
    %v57 = vmul.f32 %v35, %v55
    %58 = vset.pattern.permute.xlu0 1
    %59 = vperm.xlu0 %58, %v29
    %v60 = vpop.permute.xlu0 %59
    %v62 = vlaneseq
    %v63 = vshrl.u32 %v62, 7
    %v64 = vsub.s32 1, %v63
    %v65 = vrot.slane %v31, %v64
    %v66 = vlaneseq
    %v67 = vshrl.u32 %v66, 7
    %v68 = vsub.s32 5, %v67
    %v69 = vrot.slane %v31, %v68
    %v72 = vlaneseq
    %v73 = vshrl.u32 %v72, 7
    %v74 = vsub.s32 1, %v73
    %v75 = vrot.slane %v65, %v74
    %v76 = vlaneseq
    %v77 = vshrl.u32 %v76, 7
    %v78 = vsub.s32 1, %v77
    %v79 = vrot.slane %v69, %v78
    %v80 = vmul.f32 %v60, %v75
    %v81 = vmul.f32 %v60, %v79
    %v82 = vadd.f32 %v56, %v80
    %v83 = vadd.f32 %v57, %v81
    %84 = vset.pattern.permute.xlu0 2
    %85 = vperm.xlu0 %84, %v29
    %v86 = vpop.permute.xlu0 %85
    %v88 = vlaneseq
    %v89 = vshrl.u32 %v88, 7
    %v90 = vsub.s32 2, %v89
    %v91 = vrot.slane %v31, %v90
    %v92 = vlaneseq
    %v93 = vshrl.u32 %v92, 7
    %v94 = vsub.s32 6, %v93
    %v95 = vrot.slane %v31, %v94
    %v98 = vlaneseq
    %v99 = vshrl.u32 %v98, 7
    %v100 = vsub.s32 2, %v99
    %v101 = vrot.slane %v91, %v100
    %v102 = vlaneseq
    %v103 = vshrl.u32 %v102, 7
    %v104 = vsub.s32 2, %v103
    %v105 = vrot.slane %v95, %v104
    %v106 = vmul.f32 %v86, %v101
    %v107 = vmul.f32 %v86, %v105
    %v108 = vadd.f32 %v82, %v106
    %v109 = vadd.f32 %v83, %v107
    %110 = vset.pattern.permute.xlu0 3
    %111 = vperm.xlu0 %110, %v29
    %v112 = vpop.permute.xlu0 %111
    %v114 = vlaneseq
    %v115 = vshrl.u32 %v114, 7
    %v116 = vsub.s32 3, %v115
    %v117 = vrot.slane %v31, %v116
    %v118 = vlaneseq
    %v119 = vshrl.u32 %v118, 7
    %v120 = vsub.s32 7, %v119
    %v121 = vrot.slane %v31, %v120
    %v124 = vlaneseq
    %v125 = vshrl.u32 %v124, 7
    %v126 = vsub.s32 3, %v125
    %v127 = vrot.slane %v117, %v126
    %v128 = vlaneseq
    %v129 = vshrl.u32 %v128, 7
    %v130 = vsub.s32 3, %v129
    %v131 = vrot.slane %v121, %v130
    %v132 = vmul.f32 %v112, %v127
    %v133 = vmul.f32 %v112, %v131
    %v134 = vadd.f32 %v108, %v132
    %v135 = vadd.f32 %v109, %v133
    %vm136 = vcmask 1043456
    %v137 = vsel %vm136, %v134, 0.0
    %v138 = vsel %vm136, %v135, 0.0
    %v139 = vadd.f32 %v137, %v138
    %140 = vadd.xlane.f32.xlu0 %v139
    %v141 = vpop.xlane.xlu0 %140
    %v142 = vmul.f32 %v134, %v134
    %v143 = vmul.f32 %v135, %v135
    %v144 = vsel %vm136, %v142, 0.0
    %v145 = vsel %vm136, %v143, 0.0
    %v146 = vadd.f32 %v144, %v145
    %147 = vadd.xlane.f32.xlu0 %v146
    %v148 = vpop.xlane.xlu0 %147
    %s149 = scalar_lea.vmem [#allocation2], 8
    %v150 = vld [vmem:[%s149] sm:$0xff]
    %v152 = vlaneseq
    %v153 = vshrl.u32 %v152, 7
    %v154 = vsub.s32 0, %v153
    %v155 = vrot.slane %v150, %v154
    %v156 = vlaneseq
    %v157 = vshrl.u32 %v156, 7
    %v158 = vsub.s32 4, %v157
    %v159 = vrot.slane %v150, %v158
    %v162 = vlaneseq
    %v163 = vshrl.u32 %v162, 7
    %v164 = vsub.s32 0, %v163
    %v165 = vrot.slane %v155, %v164
    %v166 = vlaneseq
    %v167 = vshrl.u32 %v166, 7
    %v168 = vsub.s32 0, %v167
    %v169 = vrot.slane %v159, %v168
    %v170 = vmul.f32 %v35, %v165
    %v171 = vmul.f32 %v35, %v169
    %v172 = vlaneseq
    %v173 = vshrl.u32 %v172, 7
    %v174 = vsub.s32 1, %v173
    %v175 = vrot.slane %v150, %v174
    %v176 = vlaneseq
    %v177 = vshrl.u32 %v176, 7
    %v178 = vsub.s32 5, %v177
    %v179 = vrot.slane %v150, %v178
    %v182 = vlaneseq
    %v183 = vshrl.u32 %v182, 7
    %v184 = vsub.s32 1, %v183
    %v185 = vrot.slane %v175, %v184
    %v186 = vlaneseq
    %v187 = vshrl.u32 %v186, 7
    %v188 = vsub.s32 1, %v187
    %v189 = vrot.slane %v179, %v188
    %v190 = vmul.f32 %v60, %v185
    %v191 = vmul.f32 %v60, %v189
    %v192 = vadd.f32 %v170, %v190
    %v193 = vadd.f32 %v171, %v191
    %v194 = vlaneseq
    %v195 = vshrl.u32 %v194, 7
    %v196 = vsub.s32 2, %v195
    %v197 = vrot.slane %v150, %v196
    %v198 = vlaneseq
    %v199 = vshrl.u32 %v198, 7
    %v200 = vsub.s32 6, %v199
    %v201 = vrot.slane %v150, %v200
    %v204 = vlaneseq
    %v205 = vshrl.u32 %v204, 7
    %v206 = vsub.s32 2, %v205
    %v207 = vrot.slane %v197, %v206
    %v208 = vlaneseq
    %v209 = vshrl.u32 %v208, 7
    %v210 = vsub.s32 2, %v209
    %v211 = vrot.slane %v201, %v210
    %v212 = vmul.f32 %v86, %v207
    %v213 = vmul.f32 %v86, %v211
    %v214 = vadd.f32 %v192, %v212
    %v215 = vadd.f32 %v193, %v213
    %v216 = vlaneseq
    %v217 = vshrl.u32 %v216, 7
    %v218 = vsub.s32 3, %v217
    %v219 = vrot.slane %v150, %v218
    %v220 = vlaneseq
    %v221 = vshrl.u32 %v220, 7
    %v222 = vsub.s32 7, %v221
    %v223 = vrot.slane %v150, %v222
    %v226 = vlaneseq
    %v227 = vshrl.u32 %v226, 7
    %v228 = vsub.s32 3, %v227
    %v229 = vrot.slane %v219, %v228
    %v230 = vlaneseq
    %v231 = vshrl.u32 %v230, 7
    %v232 = vsub.s32 3, %v231
    %v233 = vrot.slane %v223, %v232
    %v234 = vmul.f32 %v112, %v229
    %v235 = vmul.f32 %v112, %v233
    %v236 = vadd.f32 %v214, %v234
    %v237 = vadd.f32 %v215, %v235
    %v238 = vsel %vm136, %v236, 0.0
    %v239 = vsel %vm136, %v237, 0.0
    %v240 = vadd.f32 %v238, %v239
    %241 = vadd.xlane.f32.xlu0 %v240
    %v242 = vpop.xlane.xlu0 %241
    %v243 = vmul.f32 %v236, %v236
    %v244 = vmul.f32 %v237, %v237
    %v245 = vsel %vm136, %v243, 0.0
    %v246 = vsel %vm136, %v244, 0.0
    %v247 = vadd.f32 %v245, %v246
    %248 = vadd.xlane.f32.xlu0 %v247
    %v249 = vpop.xlane.xlu0 %248
    %v250 = vadd.f32 %v141, %v242
    %v251 = vadd.f32 %v148, %v249
    %v252 = vmul.f32 %v250, 0.001953125
    %v253 = vmul.f32 %v251, 0.001953125
    %v254 = vmul.f32 %v252, %v252
    %v255 = vsub.f32 %v253, %v254
    %v256 = vmax.f32 %v255, 0.0
    %v257 = vadd.f32 %v256, 1e-05
    %v258 = vrsqrt.pop %v257
    %v259 = vsub.f32 0.0, %v252
    %v260 = vmul.f32 %v259, %v258
    %v261 = vmul.f32 %v29, %v258
    %263 = vset.pattern.permute.xlu0 0
    %264 = vperm.xlu0 %263, %v261
    %v265 = vpop.permute.xlu0 %264
    %v267 = vmul.f32 %v265, %v51
    %v268 = vmul.f32 %v265, %v55
    %269 = vset.pattern.permute.xlu0 1
    %270 = vperm.xlu0 %269, %v261
    %v271 = vpop.permute.xlu0 %270
    %v273 = vmul.f32 %v271, %v75
    %v274 = vmul.f32 %v271, %v79
    %v275 = vadd.f32 %v267, %v273
    %v276 = vadd.f32 %v268, %v274
    %277 = vset.pattern.permute.xlu0 2
    %278 = vperm.xlu0 %277, %v261
    %v279 = vpop.permute.xlu0 %278
    %v281 = vmul.f32 %v279, %v101
    %v282 = vmul.f32 %v279, %v105
    %v283 = vadd.f32 %v275, %v281
    %v284 = vadd.f32 %v276, %v282
    %285 = vset.pattern.permute.xlu0 3
    %286 = vperm.xlu0 %285, %v261
    %v287 = vpop.permute.xlu0 %286
    %v289 = vmul.f32 %v287, %v127
    %v290 = vmul.f32 %v287, %v131
    %v291 = vadd.f32 %v283, %v289
    %v292 = vadd.f32 %v284, %v290
    %v293 = vadd.f32 %v291, %v260
    %v294 = vadd.f32 %v292, %v260
    %v295 = vmax.f32 %v293, 0.0
    %v296 = vmax.f32 %v294, 0.0
    %298 = vset.pattern.permute.xlu0 0
    %299 = vperm.xlu0 %298, %v30
    %v300 = vpop.permute.xlu0 %299
    %v302 = vlaneseq
    %v303 = vshrl.u32 %v302, 7
    %v304 = vsub.s32 0, %v303
    %v305 = vrot.slane %v295, %v304
    %v306 = vlaneseq
    %v307 = vshrl.u32 %v306, 7
    %v308 = vsub.s32 0, %v307
    %v309 = vrot.slane %v296, %v308
    %v310 = vmul.f32 %v300, %v305
    %v311 = vmul.f32 %v300, %v309
    %312 = vset.pattern.permute.xlu0 1
    %313 = vperm.xlu0 %312, %v30
    %v314 = vpop.permute.xlu0 %313
    %v316 = vlaneseq
    %v317 = vshrl.u32 %v316, 7
    %v318 = vsub.s32 1, %v317
    %v319 = vrot.slane %v295, %v318
    %v320 = vlaneseq
    %v321 = vshrl.u32 %v320, 7
    %v322 = vsub.s32 1, %v321
    %v323 = vrot.slane %v296, %v322
    %v324 = vmul.f32 %v314, %v319
    %v325 = vmul.f32 %v314, %v323
    %v326 = vadd.f32 %v310, %v324
    %v327 = vadd.f32 %v311, %v325
    %328 = vset.pattern.permute.xlu0 2
    %329 = vperm.xlu0 %328, %v30
    %v330 = vpop.permute.xlu0 %329
    %v332 = vlaneseq
    %v333 = vshrl.u32 %v332, 7
    %v334 = vsub.s32 2, %v333
    %v335 = vrot.slane %v295, %v334
    %v336 = vlaneseq
    %v337 = vshrl.u32 %v336, 7
    %v338 = vsub.s32 2, %v337
    %v339 = vrot.slane %v296, %v338
    %v340 = vmul.f32 %v330, %v335
    %v341 = vmul.f32 %v330, %v339
    %v342 = vadd.f32 %v326, %v340
    %v343 = vadd.f32 %v327, %v341
    %344 = vset.pattern.permute.xlu0 3
    %345 = vperm.xlu0 %344, %v30
    %v346 = vpop.permute.xlu0 %345
    %v348 = vlaneseq
    %v349 = vshrl.u32 %v348, 7
    %v350 = vsub.s32 3, %v349
    %v351 = vrot.slane %v295, %v350
    %v352 = vlaneseq
    %v353 = vshrl.u32 %v352, 7
    %v354 = vsub.s32 3, %v353
    %v355 = vrot.slane %v296, %v354
    %v356 = vmul.f32 %v346, %v351
    %v357 = vmul.f32 %v346, %v355
    %v358 = vadd.f32 %v342, %v356
    %v359 = vadd.f32 %v343, %v357
    %360 = vst [vmem:[#allocation5] sm:$0xff] %v358
    %361 = vst [vmem:[#allocation5 + $0x8] sm:$0xff] %v359
    %v362 = vld [vmem:[%s149] sm:$0xff]
    %v364 = vlaneseq
    %v365 = vshrl.u32 %v364, 7
    %v366 = vsub.s32 0, %v365
    %v367 = vrot.slane %v362, %v366
    %v368 = vlaneseq
    %v369 = vshrl.u32 %v368, 7
    %v370 = vsub.s32 4, %v369
    %v371 = vrot.slane %v362, %v370
    %v374 = vlaneseq
    %v375 = vshrl.u32 %v374, 7
    %v376 = vsub.s32 0, %v375
    %v377 = vrot.slane %v367, %v376
    %v378 = vlaneseq
    %v379 = vshrl.u32 %v378, 7
    %v380 = vsub.s32 0, %v379
    %v381 = vrot.slane %v371, %v380
    %v382 = vmul.f32 %v265, %v377
    %v383 = vmul.f32 %v265, %v381
    %v384 = vlaneseq
    %v385 = vshrl.u32 %v384, 7
    %v386 = vsub.s32 1, %v385
    %v387 = vrot.slane %v362, %v386
    %v388 = vlaneseq
    %v389 = vshrl.u32 %v388, 7
    %v390 = vsub.s32 5, %v389
    %v391 = vrot.slane %v362, %v390
    %v394 = vlaneseq
    %v395 = vshrl.u32 %v394, 7
    %v396 = vsub.s32 1, %v395
    %v397 = vrot.slane %v387, %v396
    %v398 = vlaneseq
    %v399 = vshrl.u32 %v398, 7
    %v400 = vsub.s32 1, %v399
    %v401 = vrot.slane %v391, %v400
    %v402 = vmul.f32 %v271, %v397
    %v403 = vmul.f32 %v271, %v401
    %v404 = vadd.f32 %v382, %v402
    %v405 = vadd.f32 %v383, %v403
    %v406 = vlaneseq
    %v407 = vshrl.u32 %v406, 7
    %v408 = vsub.s32 2, %v407
    %v409 = vrot.slane %v362, %v408
    %v410 = vlaneseq
    %v411 = vshrl.u32 %v410, 7
    %v412 = vsub.s32 6, %v411
    %v413 = vrot.slane %v362, %v412
    %v416 = vlaneseq
    %v417 = vshrl.u32 %v416, 7
    %v418 = vsub.s32 2, %v417
    %v419 = vrot.slane %v409, %v418
    %v420 = vlaneseq
    %v421 = vshrl.u32 %v420, 7
    %v422 = vsub.s32 2, %v421
    %v423 = vrot.slane %v413, %v422
    %v424 = vmul.f32 %v279, %v419
    %v425 = vmul.f32 %v279, %v423
    %v426 = vadd.f32 %v404, %v424
    %v427 = vadd.f32 %v405, %v425
    %v428 = vlaneseq
    %v429 = vshrl.u32 %v428, 7
    %v430 = vsub.s32 3, %v429
    %v431 = vrot.slane %v362, %v430
    %v432 = vlaneseq
    %v433 = vshrl.u32 %v432, 7
    %v434 = vsub.s32 7, %v433
    %v435 = vrot.slane %v362, %v434
    %v438 = vlaneseq
    %v439 = vshrl.u32 %v438, 7
    %v440 = vsub.s32 3, %v439
    %v441 = vrot.slane %v431, %v440
    %v442 = vlaneseq
    %v443 = vshrl.u32 %v442, 7
    %v444 = vsub.s32 3, %v443
    %v445 = vrot.slane %v435, %v444
    %v446 = vmul.f32 %v287, %v441
    %v447 = vmul.f32 %v287, %v445
    %v448 = vadd.f32 %v426, %v446
    %v449 = vadd.f32 %v427, %v447
    %v450 = vadd.f32 %v448, %v260
    %v451 = vadd.f32 %v449, %v260
    %v452 = vmax.f32 %v450, 0.0
    %v453 = vmax.f32 %v451, 0.0
    %v454 = vlaneseq
    %v455 = vshrl.u32 %v454, 7
    %v456 = vsub.s32 0, %v455
    %v457 = vrot.slane %v452, %v456
    %v458 = vlaneseq
    %v459 = vshrl.u32 %v458, 7
    %v460 = vsub.s32 0, %v459
    %v461 = vrot.slane %v453, %v460
    %v462 = vmul.f32 %v300, %v457
    %v463 = vmul.f32 %v300, %v461
    %v464 = vlaneseq
    %v465 = vshrl.u32 %v464, 7
    %v466 = vsub.s32 1, %v465
    %v467 = vrot.slane %v452, %v466
    %v468 = vlaneseq
    %v469 = vshrl.u32 %v468, 7
    %v470 = vsub.s32 1, %v469
    %v471 = vrot.slane %v453, %v470
    %v472 = vmul.f32 %v314, %v467
    %v473 = vmul.f32 %v314, %v471
    %v474 = vadd.f32 %v462, %v472
    %v475 = vadd.f32 %v463, %v473
    %v476 = vlaneseq
    %v477 = vshrl.u32 %v476, 7
    %v478 = vsub.s32 2, %v477
    %v479 = vrot.slane %v452, %v478
    %v480 = vlaneseq
    %v481 = vshrl.u32 %v480, 7
    %v482 = vsub.s32 2, %v481
    %v483 = vrot.slane %v453, %v482
    %v484 = vmul.f32 %v330, %v479
    %v485 = vmul.f32 %v330, %v483
    %v486 = vadd.f32 %v474, %v484
    %v487 = vadd.f32 %v475, %v485
    %v488 = vlaneseq
    %v489 = vshrl.u32 %v488, 7
    %v490 = vsub.s32 3, %v489
    %v491 = vrot.slane %v452, %v490
    %v492 = vlaneseq
    %v493 = vshrl.u32 %v492, 7
    %v494 = vsub.s32 3, %v493
    %v495 = vrot.slane %v453, %v494
    %v496 = vmul.f32 %v346, %v491
    %v497 = vmul.f32 %v346, %v495
    %v498 = vadd.f32 %v486, %v496
    %v499 = vadd.f32 %v487, %v497
    %s500 = scalar_lea.vmem [#allocation5], 16
    %501 = vst [vmem:[%s500] sm:$0xff] %v498
    %502 = vst [vmem:[%s500 + $0x8] sm:$0xff] %v499
    // Predicated region
    $region18: #{tpu_custom_call.1} parent=1 // pred_check
      _
    $region19: #{tpu_custom_call.1} parent=1 // pred_check_branch
      %504 = sbr.rel (0) target = $region21
    $region20: #{tpu_custom_call.1} parent=1 // pred_region
      %s506 = ssub.s32 512, 512
      %507 = vsyncadd [#allocation4], %s506
      %s508 = sshll.u32 [#allocation5], 4
      %s509 = int_to_ptr.vmem [resolvable:$true] %s508
      %514 = dma.vmem_to_hbm [thread:$0]  %s509, 512, %s3, [#allocation4], 256, 256, 16
    $region21: #{tpu_custom_call.1} parent=1 // pred_fallthru
      _
    // Predicated region
    $region22: #{tpu_custom_call.1} parent=1 // pred_check
      _
    $region23: #{tpu_custom_call.1} parent=1 // pred_check_branch
      %516 = sbr.rel (0) target = $region25
    $region24: #{tpu_custom_call.1} parent=1 // pred_region
      %517 = dma.done [#allocation4], 512
    $region25: #{tpu_custom_call.1} parent=1 // pred_fallthru
      _
    %518 = vsyncpa [#allocation3], 1
    %519 = vsyncpa [#allocation4], 1

</llo_original>
